<compile_context>
chip_gen: v5e
topology: v5e:2x2
jax: 0.10.0
libtpu: 0.0.40
codegen_flags: <defaults>
</compile_context>

<pallas_src>
import jax
import jax.numpy as jnp
from jax.experimental import pallas as pl
from jax.experimental.pallas import tpu as pltpu

EPS = 1e-5


# ----------------------------- Pallas kernels -----------------------------

def conv_stats_kernel(p_ref, w_ref, y_ref, stats_ref):
    # Conv tile on the MXU: bf16 x bf16 -> f32 accumulator.
    y = jnp.dot(p_ref[...], w_ref[...], preferred_element_type=jnp.float32)
    # Per-tile partial BN statistics in f32 while the tile is resident
    # (cross-sublane reduce goes to the XLU slot, not the MXU -> ~free).
    s = jnp.sum(y, axis=0, keepdims=True)          # (1, C) channel sum
    sq = jnp.sum(y * y, axis=0, keepdims=True)     # (1, C) channel sum of squares
    c = s.shape[1]
    row = jax.lax.broadcasted_iota(jnp.int32, (8, c), 0)
    stats_ref[...] = jnp.where(row == 0, jnp.broadcast_to(s, (8, c)),
                               jnp.where(row == 1, jnp.broadcast_to(sq, (8, c)),
                                         0.0))      # rows 0/1 = sum / sumsq
    # Pre-BN activations stored bf16: halves the dominant HBM intermediate.
    y_ref[...] = y.astype(y_ref.dtype)


def bn_relu_kernel(y_ref, scale_ref, shift_ref, o_ref):
    # Fused normalize + affine + ReLU: out = max(y * scale + shift, 0)
    y = y_ref[...].astype(jnp.float32)
    o_ref[...] = jnp.maximum(y * scale_ref[...] + shift_ref[...], 0.0)


# ----------------------------- wrapper (JAX glue) --------------------------

def _round_up(x, m):
    return (x + m - 1) // m * m


def _pick_tile_m(M, Kp, Cout):
    # VMEM per output row, conservatively lane-padded to 128 and double
    # buffered.  8 MiB budget sits comfortably under the scoped-VMEM defaults
    # of v5e (16 MiB), v6e (32 MiB) and v7x (32 of 64 MiB).
    lanes_k = max(_round_up(Kp, 128), 128)
    lanes_c = max(_round_up(Cout, 128), 128)
    per_row = max(2 * (lanes_k * 2 + lanes_c * 2),   # phase 1: bf16 patches + bf16 y
                  2 * (lanes_c * 2 + lanes_c * 4))   # phase 2: bf16 y + f32 out
    budget = 8 * 1024 * 1024 - 2 * Kp * lanes_c * 2  # minus double-buffered weights
    t = max(128, min(1024, (budget // per_row) // 128 * 128))  # 128-granular
    return min(t, _round_up(M, 8))


def encoder_padding(x_nchw, kernel_size, stride):
    """Mirror of EncoderPadding.forward (note: extra remain-pad is H only)."""
    base = kernel_size // 2
    x = jnp.pad(x_nchw, ((0, 0), (0, 0), (base, base), (base, base)))
    length = x.shape[-2]
    remain = length % stride
    leftpad = remain // 2
    rightpad = remain // 2 + remain % 2
    # F.pad(x, (0, 0, leftpad, rightpad)) pads only dim -2 (H)
    return jnp.pad(x, ((0, 0), (0, 0), (leftpad, rightpad), (0, 0)))


def im2col(x_nhwc, kh, kw, stride):
    N, H, W, C = x_nhwc.shape
    Ho = (H - kh) // stride + 1
    Wo = (W - kw) // stride + 1
    cols = []
    for i in range(kh):
        for j in range(kw):
            cols.append(x_nhwc[:, i:i + stride * (Ho - 1) + 1:stride,
                               j:j + stride * (Wo - 1) + 1:stride, :])
    p = jnp.stack(cols, axis=3)                      # (N, Ho, Wo, kh*kw, C)
    return p.reshape(N * Ho * Wo, kh * kw * C), Ho, Wo


def conv_block_forward(x_nchw, conv_w, conv_b, gamma, beta, *, stride):
    del conv_b  # train-mode BN subtracts the batch mean -> conv bias is a no-op
    N = x_nchw.shape[0]
    Cout, Cin, kh, kw = conv_w.shape

    xp = encoder_padding(x_nchw, kh, stride)
    x_nhwc = jnp.transpose(xp, (0, 2, 3, 1))
    patches, Ho, Wo = im2col(x_nhwc, kh, kw, stride)      # (M, K) f32
    M, K = patches.shape

    Kp = _round_up(K, 8)            # sublane-aligned contraction dim
    tile_m = _pick_tile_m(M, Kp, Cout)
    Mp = _round_up(M, tile_m)
    nt = Mp // tile_m

    patches_p = jnp.pad(patches, ((0, Mp - M), (0, Kp - K))).astype(jnp.bfloat16)
    # (Cout, Cin, kh, kw) -> (kh, kw, Cin, Cout) -> (K, Cout): matches K order
    w_mat = jnp.transpose(conv_w, (2, 3, 1, 0)).reshape(K, Cout)
    w_p = jnp.pad(w_mat, ((0, Kp - K), (0, 0))).astype(jnp.bfloat16)
    gamma_f = gamma.astype(jnp.float32)
    beta_f = beta.astype(jnp.float32)

    cparams = pltpu.CompilerParams(
        dimension_semantics=("parallel",),        # tiles independent -> megacore
        vmem_limit_bytes=32 * 1024 * 1024)

    # ---- phase 1: conv matmul + per-tile channel sum / sum-of-squares ----
    y, stats = pl.pallas_call(
        conv_stats_kernel,
        out_shape=(jax.ShapeDtypeStruct((Mp, Cout), jnp.bfloat16),
                   jax.ShapeDtypeStruct((nt * 8, Cout), jnp.float32)),
        grid=(nt,),
        in_specs=[pl.BlockSpec((tile_m, Kp), lambda i: (i, 0)),
                  pl.BlockSpec((Kp, Cout), lambda i: (0, 0))],
        out_specs=(pl.BlockSpec((tile_m, Cout), lambda i: (i, 0)),
                   pl.BlockSpec((8, Cout), lambda i: (i, 0))),
        compiler_params=cparams,
    )(patches_p, w_p)

    # ---- combine partials -> global batch stats (tiny, plain JAX) ----
    stats = stats.reshape(nt, 8, Cout)
    ssum = jnp.sum(stats[:, 0, :], axis=0)
    ssq = jnp.sum(stats[:, 1, :], axis=0)
    mean = ssum / M                                     # padded rows add exactly 0
    var = jnp.maximum(ssq / M - mean * mean, 0.0)       # biased var (train-mode BN)
    inv = jax.lax.rsqrt(var + EPS)
    scale = (gamma_f * inv)[None, :]                    # (1, Cout)
    shift = (beta_f - mean * gamma_f * inv)[None, :]    # (1, Cout)

    # ---- phase 2: normalize + affine + ReLU writeback ----
    out = pl.pallas_call(
        bn_relu_kernel,
        out_shape=jax.ShapeDtypeStruct((Mp, Cout), jnp.float32),
        grid=(nt,),
        in_specs=[pl.BlockSpec((tile_m, Cout), lambda i: (i, 0)),
                  pl.BlockSpec((1, Cout), lambda i: (0, 0)),
                  pl.BlockSpec((1, Cout), lambda i: (0, 0))],
        out_specs=pl.BlockSpec((tile_m, Cout), lambda i: (i, 0)),
        compiler_params=cparams,
    )(y, scale, shift)

    out = out[:M].reshape(N, Ho, Wo, Cout)
    return jnp.transpose(out, (0, 3, 1, 2))             # back to NCHW


# ----------------------------- pure-JAX reference ---------------------------

def reference(x_nchw, conv_w, conv_b, gamma, beta, *, stride):
    """Pure-JAX reference of ConvBlock.forward (training-mode BN)."""
    kh = conv_w.shape[2]
    xp = encoder_padding(x_nchw, kh, stride)
    y = jax.lax.conv_general_dilated(
        xp, conv_w, (stride, stride), 'VALID',
        dimension_numbers=('NCHW', 'OIHW', 'NCHW'),
        precision=jax.lax.Precision.HIGHEST) + conv_b.reshape(1, -1, 1, 1)
    m = jnp.mean(y, axis=(0, 2, 3), keepdims=True)
    v = jnp.mean((y - m) ** 2, axis=(0, 2, 3), keepdims=True)
    yhat = (y - m) / jnp.sqrt(v + EPS)
    return jnp.maximum(gamma.reshape(1, -1, 1, 1) * yhat
                       + beta.reshape(1, -1, 1, 1), 0.0)


if __name__ == "__main__":
    # Small shapes consistent with the module: NCHW input, odd kernel, stride 2.
    N, Cin, H, W = 2, 4, 16, 16
    Cout, ksize, stride = 8, 3, 2

    key = jax.random.PRNGKey(0)
    kx, kw_, kb, kg, kbeta = jax.random.split(key, 5)
    x = jax.random.normal(kx, (N, Cin, H, W), dtype=jnp.float32)
    conv_w = 0.1 * jax.random.normal(kw_, (Cout, Cin, ksize, ksize), jnp.float32)
    conv_b = 0.1 * jax.random.normal(kb, (Cout,), jnp.float32)
    gamma = 1.0 + 0.1 * jax.random.normal(kg, (Cout,), jnp.float32)
    beta = 0.1 * jax.random.normal(kbeta, (Cout,), jnp.float32)

    out = conv_block_forward(x, conv_w, conv_b, gamma, beta, stride=stride)
    out = jax.block_until_ready(out)

    ref = reference(x, conv_w, conv_b, gamma, beta, stride=stride)
    assert out.shape == ref.shape, (out.shape, ref.shape)
    # bf16 MXU inputs + bf16 storage of the pre-BN activations (f32 accumulation
    # and f32 BN statistics) trade a little precision for ~2x less HBM traffic
    # on both the patch matrix and the dominant intermediate; tolerance sized
    # for that on the O(1) post-BN outputs.
    err = float(jnp.max(jnp.abs(out - ref)))
    assert err < 3e-2, f"max abs err {err}"

    print("KERNEL_OK")
</pallas_src>

<mosaic_0001>
module attributes {stable_mosaic.version = 11 : i64} {
  func.func @conv_stats_kernel(%arg0: i32, %arg1: memref<128x40xbf16, #tpu.memory_space<vmem>>, %arg2: memref<40x8xbf16, #tpu.memory_space<vmem>>, %arg3: memref<128x8xbf16, #tpu.memory_space<vmem>>, %arg4: memref<8x8xf32, #tpu.memory_space<vmem>>) attributes {dimension_semantics = [#tpu.dimension_semantics<parallel>], iteration_bounds = array<i64: 1>, scalar_prefetch = 0 : i64, scratch_operands = 0 : i64, tpu.core_type = #tpu.core_type<tc>, window_params = [{transform_indices = @transform_0, window_bounds = array<i64: 128, 40>}, {pipeline_mode = #tpu.pipeline_mode<synchronous>, transform_indices = @transform_1, window_bounds = array<i64: 40, 8>}, {transform_indices = @transform_2, window_bounds = array<i64: 128, 8>}, {transform_indices = @transform_3, window_bounds = array<i64: 8, 8>}]} {
    %c0 = arith.constant 0 : index
    %c0_0 = arith.constant 0 : index
    %0 = vector.load %arg1[%c0, %c0_0] : memref<128x40xbf16, #tpu.memory_space<vmem>>, vector<128x40xbf16>
    %c0_1 = arith.constant 0 : index
    %c0_2 = arith.constant 0 : index
    %1 = vector.load %arg2[%c0_1, %c0_2] : memref<40x8xbf16, #tpu.memory_space<vmem>>, vector<40x8xbf16>
    %cst = arith.constant dense<0.000000e+00> : vector<128x8xf32>
    %2 = tpu.matmul %0, %1, %cst {dimension_numbers = #tpu.dot_dimension_numbers<[1], [0], [0], [1], [0, 0, 1, 1], [], []>} : vector<128x40xbf16>, vector<40x8xbf16>, vector<128x8xf32> -> vector<128x8xf32>
    %cst_3 = arith.constant dense<0.000000e+00> : vector<8xf32>
    %3 = vector.multi_reduction <add>, %2, %cst_3 [0] : vector<128x8xf32> to vector<8xf32>
    %4 = vector.shape_cast %3 : vector<8xf32> to vector<1x8xf32>
    %5 = arith.mulf %2, %2 : vector<128x8xf32>
    %cst_4 = arith.constant dense<0.000000e+00> : vector<8xf32>
    %6 = vector.multi_reduction <add>, %5, %cst_4 [0] : vector<128x8xf32> to vector<8xf32>
    %7 = vector.shape_cast %6 : vector<8xf32> to vector<1x8xf32>
    %8 = tpu.iota {dimensions = array<i32: 0>} : vector<8x8xi32>
    %c0_i32 = arith.constant 0 : i32
    %9 = vector.broadcast %c0_i32 : i32 to vector<8x8xi32>
    %10 = arith.cmpi eq, %8, %9 : vector<8x8xi32>
    %11 = vector.shape_cast %4 : vector<1x8xf32> to vector<1x8xf32>
    %12 = vector.broadcast %11 : vector<1x8xf32> to vector<8x8xf32>
    %c1_i32 = arith.constant 1 : i32
    %13 = vector.broadcast %c1_i32 : i32 to vector<8x8xi32>
    %14 = arith.cmpi eq, %8, %13 : vector<8x8xi32>
    %15 = vector.shape_cast %7 : vector<1x8xf32> to vector<1x8xf32>
    %16 = vector.broadcast %15 : vector<1x8xf32> to vector<8x8xf32>
    %cst_5 = arith.constant 0.000000e+00 : f32
    %17 = vector.broadcast %cst_5 : f32 to vector<8x8xf32>
    %18 = arith.select %14, %16, %17 : vector<8x8xi1>, vector<8x8xf32>
    %19 = arith.select %10, %12, %18 : vector<8x8xi1>, vector<8x8xf32>
    %c0_6 = arith.constant 0 : index
    %c0_7 = arith.constant 0 : index
    %20 = vector.load %arg4[%c0_6, %c0_7] : memref<8x8xf32, #tpu.memory_space<vmem>>, vector<8x8xf32>
    tpu.vector_store %arg4[%c0_6, %c0_7], %19 {strides = array<i32>} : memref<8x8xf32, #tpu.memory_space<vmem>>, vector<8x8xf32>,
    %21 = arith.truncf %2 : vector<128x8xf32> to vector<128x8xbf16>
    %c0_8 = arith.constant 0 : index
    %c0_9 = arith.constant 0 : index
    %22 = vector.load %arg3[%c0_8, %c0_9] : memref<128x8xbf16, #tpu.memory_space<vmem>>, vector<128x8xbf16>
    tpu.vector_store %arg3[%c0_8, %c0_9], %21 {strides = array<i32>} : memref<128x8xbf16, #tpu.memory_space<vmem>>, vector<128x8xbf16>,
    return
  }
  func.func @transform_0(%arg0: i32) -> (i32, i32) {
    %c0_i32 = arith.constant 0 : i32
    %c0_i32_0 = arith.constant 0 : i32
    return %arg0, %c0_i32 : i32, i32
  }
  func.func @transform_1(%arg0: i32) -> (i32, i32) {
    %c0_i32 = arith.constant 0 : i32
    %c0_i32_0 = arith.constant 0 : i32
    %c0_i32_1 = arith.constant 0 : i32
    return %c0_i32, %c0_i32_0 : i32, i32
  }
  func.func @transform_2(%arg0: i32) -> (i32, i32) {
    %c0_i32 = arith.constant 0 : i32
    %c0_i32_0 = arith.constant 0 : i32
    return %arg0, %c0_i32 : i32, i32
  }
  func.func @transform_3(%arg0: i32) -> (i32, i32) {
    %c0_i32 = arith.constant 0 : i32
    %c0_i32_0 = arith.constant 0 : i32
    return %arg0, %c0_i32 : i32, i32
  }
}

</mosaic_0001>

<llo_original>
// kernel: tpu_custom_call.1
$region0: #{tpu_custom_call.1}
  #allocation0 [shape = 'u32[]', space=smem, size = 0x4, offset = 0x4, fixed_abs, tag = 'smem constant byte address 0x4 - core index']
  #allocation1 [shape = 'u32[72,128]{1,0:T(1,128)}', space=vmem, size = 0x9000, scoped, tag = 'internal scratch']
  %s0 = inlined_call_operand.vmem [shape: bf16[128,40], index: 0, kind: input, shape index: {}]
  %s1 = inlined_call_operand.vmem [shape: bf16[40,8], index: 1, kind: input, shape index: {}]
  %s2 = inlined_call_operand.vmem [shape: bf16[128,8], index: 2, kind: output, shape index: {0}]
  %s3 = inlined_call_operand.hbm [shape: f32[8,8], index: 3, kind: output, shape index: {1}]
  %4 = xla_tuple %s2, %s3
  %s5 = sld [smem:[#allocation0]]
  $region26: #{tpu_custom_call.1} parent=0
    _
  %s7 = ssub.s32 1, %s5
  %s8 = scalar_select 0, %s7, %s5
  $region1: #{tpu_custom_call.1} parent=0
    #allocation2 [shape = 'u8[4096]{0}', space=vmem, size = 0x1000, scoped, tag = 'output window, operand 1, single buffered']
    #allocation3 [shape = 's32[1]{0}', space=sflag, size = 0x4, scoped, tag = 'scoped memory for tpu_custom_call.1']
    %9 = vsyncpa [#allocation3], 0
    // Predicated region
    $region2: #{tpu_custom_call.1} parent=1 // pred_check
      _
    $region3: #{tpu_custom_call.1} parent=1 // pred_check_branch
      %11 = sbr.rel (0) target = $region5
    $region4: #{tpu_custom_call.1} parent=1 // pred_region
      _
    $region5: #{tpu_custom_call.1} parent=1 // pred_fallthru
      _
    // Predicated region
    $region6: #{tpu_custom_call.1} parent=1 // pred_check
      _
    $region7: #{tpu_custom_call.1} parent=1 // pred_check_branch
      %13 = sbr.rel (0) target = $region9
    $region8: #{tpu_custom_call.1} parent=1 // pred_region
      _
    $region9: #{tpu_custom_call.1} parent=1 // pred_fallthru
      _
    %v15 = vld [vmem:[%s0] sm:$0xf]
    %v16 = vld [vmem:[%s0 + $0x4] sm:$0xf]
    %v17 = vld [vmem:[%s0 + $0x8] sm:$0xf]
    %v18 = vld [vmem:[%s0 + $0xc] sm:$0xf]
    %v19 = vld [vmem:[%s0 + $0x10] sm:$0xf]
    %v20 = vld [vmem:[%s0 + $0x14] sm:$0xf]
    %v21 = vld [vmem:[%s0 + $0x18] sm:$0xf]
    %v22 = vld [vmem:[%s0 + $0x1c] sm:$0xf]
    %v23 = vld [vmem:[%s0 + $0x20] sm:$0xf]
    %v24 = vld [vmem:[%s0 + $0x24] sm:$0xf]
    %v25 = vld [vmem:[%s0 + $0x28] sm:$0xf]
    %v26 = vld [vmem:[%s0 + $0x2c] sm:$0xf]
    %v27 = vld [vmem:[%s0 + $0x30] sm:$0xf]
    %v28 = vld [vmem:[%s0 + $0x34] sm:$0xf]
    %v29 = vld [vmem:[%s0 + $0x38] sm:$0xf]
    %v30 = vld [vmem:[%s0 + $0x3c] sm:$0xf]
    %v31 = vld [vmem:[%s1] sm:$0xf]
    %v32 = vld [vmem:[%s1 + $0x4] sm:$0xf]
    %v33 = vld [vmem:[%s1 + $0x8] sm:$0xf]
    %v34 = vld [vmem:[%s1 + $0xc] sm:$0xf]
    %v35 = vld [vmem:[%s1 + $0x10] sm:$0xf]
    %v52 = vunpack.c.l.b16 %v15
    %v53 = vunpack.c.l.b16 %v16
    %v54 = vunpack.c.l.b16 %v17
    %v55 = vunpack.c.l.b16 %v18
    %v56 = vunpack.c.l.b16 %v19
    %v57 = vunpack.c.l.b16 %v20
    %v58 = vunpack.c.l.b16 %v21
    %v59 = vunpack.c.l.b16 %v22
    %v60 = vunpack.c.l.b16 %v23
    %v61 = vunpack.c.l.b16 %v24
    %v62 = vunpack.c.l.b16 %v25
    %v63 = vunpack.c.l.b16 %v26
    %v64 = vunpack.c.l.b16 %v27
    %v65 = vunpack.c.l.b16 %v28
    %v66 = vunpack.c.l.b16 %v29
    %v67 = vunpack.c.l.b16 %v30
    %v68 = vpack.c.b16 %v53, %v52
    %v69 = vpack.c.b16 %v55, %v54
    %v70 = vpack.c.b16 %v57, %v56
    %v71 = vpack.c.b16 %v59, %v58
    %v72 = vpack.c.b16 %v61, %v60
    %v73 = vpack.c.b16 %v63, %v62
    %v74 = vpack.c.b16 %v65, %v64
    %v75 = vpack.c.b16 %v67, %v66
    %v81 = vunpack.c.l.b16 %v31
    %v82 = vunpack.c.l.b16 %v32
    %v83 = vunpack.c.l.b16 %v33
    %v84 = vunpack.c.l.b16 %v34
    %v85 = vunpack.c.l.b16 %v35
    %v86 = vpack.c.b16 %v82, %v81
    %v87 = vpack.c.b16 %v84, %v83
    %v88 = vpack.c.b16 %v85, %v85
    %vm91 = vcmask 326656
    %v93 = vsel %vm91, %v68, 0
    %v96 = vsel %vm91, %v69, 0
    %v99 = vsel %vm91, %v70, 0
    %v102 = vsel %vm91, %v71, 0
    %v105 = vsel %vm91, %v72, 0
    %v108 = vsel %vm91, %v73, 0
    %v111 = vsel %vm91, %v74, 0
    %v114 = vsel %vm91, %v75, 0
    %vm116 = vcmask 1043456
    %v118 = vsel %vm116, %v88, 0
    %120 = vmatpush.bf16.msra.mxu0 0
    %121 = vmatpush.bf16.msra.mxu0 0
    %122 = vmatpush.bf16.msra.mxu0 0
    %123 = vmatpush.bf16.msra.mxu0 0
    %124 = vmatpush.bf16.msra.mxu0 0
    %125 = vmatpush.bf16.msra.mxu0 %v118
    %126 = vmatpush.bf16.msra.mxu0 %v87
    %127 = vmatpush.bf16.msra.mxu0 %v86
    %128 = vmatmul.bf16.gmra.mxu0 %v93
    %v129 = vpop.f32.mrf.mxu0
    %v130 = vadd.f32 0.0, %v129
    %v131 = vpop.f32.mrf.mxu0
    %v132 = vadd.f32 0.0, %v131
    %133 = vmatmul.bf16.gmra.mxu0 %v96
    %v134 = vpop.f32.mrf.mxu0
    %v135 = vadd.f32 0.0, %v134
    %v136 = vpop.f32.mrf.mxu0
    %v137 = vadd.f32 0.0, %v136
    %138 = vmatmul.bf16.gmra.mxu0 %v99
    %v139 = vpop.f32.mrf.mxu0
    %v140 = vadd.f32 0.0, %v139
    %v141 = vpop.f32.mrf.mxu0
    %v142 = vadd.f32 0.0, %v141
    %143 = vmatmul.bf16.gmra.mxu0 %v102
    %v144 = vpop.f32.mrf.mxu0
    %v145 = vadd.f32 0.0, %v144
    %v146 = vpop.f32.mrf.mxu0
    %v147 = vadd.f32 0.0, %v146
    %148 = vmatmul.bf16.gmra.mxu0 %v105
    %v149 = vpop.f32.mrf.mxu0
    %v150 = vadd.f32 0.0, %v149
    %v151 = vpop.f32.mrf.mxu0
    %v152 = vadd.f32 0.0, %v151
    %153 = vmatmul.bf16.gmra.mxu0 %v108
    %v154 = vpop.f32.mrf.mxu0
    %v155 = vadd.f32 0.0, %v154
    %v156 = vpop.f32.mrf.mxu0
    %v157 = vadd.f32 0.0, %v156
    %158 = vmatmul.bf16.gmra.mxu0 %v111
    %v159 = vpop.f32.mrf.mxu0
    %v160 = vadd.f32 0.0, %v159
    %v161 = vpop.f32.mrf.mxu0
    %v162 = vadd.f32 0.0, %v161
    %163 = vmatmul.bf16.gmra.mxu0 %v114
    %v164 = vpop.f32.mrf.mxu0
    %v165 = vadd.f32 0.0, %v164
    %v166 = vpop.f32.mrf.mxu0
    %v167 = vadd.f32 0.0, %v166
    %168 = vdwg.mxu0
    %vm169 = vcmask 64512
    %v170 = vsel %vm169, %v130, 0.0
    %v171 = vsel %vm169, %v132, 0.0
    %v172 = vadd.f32 %v170, %v171
    %v173 = vsel %vm169, %v135, 0.0
    %v174 = vadd.f32 %v172, %v173
    %v175 = vsel %vm169, %v137, 0.0
    %v176 = vadd.f32 %v174, %v175
    %v177 = vsel %vm169, %v140, 0.0
    %v178 = vadd.f32 %v176, %v177
    %v179 = vsel %vm169, %v142, 0.0
    %v180 = vadd.f32 %v178, %v179
    %v181 = vsel %vm169, %v145, 0.0
    %v182 = vadd.f32 %v180, %v181
    %v183 = vsel %vm169, %v147, 0.0
    %v184 = vadd.f32 %v182, %v183
    %v185 = vsel %vm169, %v150, 0.0
    %v186 = vadd.f32 %v184, %v185
    %v187 = vsel %vm169, %v152, 0.0
    %v188 = vadd.f32 %v186, %v187
    %v189 = vsel %vm169, %v155, 0.0
    %v190 = vadd.f32 %v188, %v189
    %v191 = vsel %vm169, %v157, 0.0
    %v192 = vadd.f32 %v190, %v191
    %v193 = vsel %vm169, %v160, 0.0
    %v194 = vadd.f32 %v192, %v193
    %v195 = vsel %vm169, %v162, 0.0
    %v196 = vadd.f32 %v194, %v195
    %v197 = vsel %vm169, %v165, 0.0
    %v198 = vadd.f32 %v196, %v197
    %v199 = vsel %vm169, %v167, 0.0
    %v200 = vadd.f32 %v198, %v199
    %v201 = vrot.slane %v200, 4
    %v202 = vadd.f32 %v200, %v201
    %v203 = vrot.slane %v202, 2
    %v204 = vadd.f32 %v202, %v203
    %v205 = vrot.slane %v204, 1
    %v206 = vadd.f32 %v204, %v205
    %v207 = vmul.f32 %v130, %v130
    %v208 = vmul.f32 %v132, %v132
    %v209 = vmul.f32 %v135, %v135
    %v210 = vmul.f32 %v137, %v137
    %v211 = vmul.f32 %v140, %v140
    %v212 = vmul.f32 %v142, %v142
    %v213 = vmul.f32 %v145, %v145
    %v214 = vmul.f32 %v147, %v147
    %v215 = vmul.f32 %v150, %v150
    %v216 = vmul.f32 %v152, %v152
    %v217 = vmul.f32 %v155, %v155
    %v218 = vmul.f32 %v157, %v157
    %v219 = vmul.f32 %v160, %v160
    %v220 = vmul.f32 %v162, %v162
    %v221 = vmul.f32 %v165, %v165
    %v222 = vmul.f32 %v167, %v167
    %v223 = vsel %vm169, %v207, 0.0
    %v224 = vsel %vm169, %v208, 0.0
    %v225 = vadd.f32 %v223, %v224
    %v226 = vsel %vm169, %v209, 0.0
    %v227 = vadd.f32 %v225, %v226
    %v228 = vsel %vm169, %v210, 0.0
    %v229 = vadd.f32 %v227, %v228
    %v230 = vsel %vm169, %v211, 0.0
    %v231 = vadd.f32 %v229, %v230
    %v232 = vsel %vm169, %v212, 0.0
    %v233 = vadd.f32 %v231, %v232
    %v234 = vsel %vm169, %v213, 0.0
    %v235 = vadd.f32 %v233, %v234
    %v236 = vsel %vm169, %v214, 0.0
    %v237 = vadd.f32 %v235, %v236
    %v238 = vsel %vm169, %v215, 0.0
    %v239 = vadd.f32 %v237, %v238
    %v240 = vsel %vm169, %v216, 0.0
    %v241 = vadd.f32 %v239, %v240
    %v242 = vsel %vm169, %v217, 0.0
    %v243 = vadd.f32 %v241, %v242
    %v244 = vsel %vm169, %v218, 0.0
    %v245 = vadd.f32 %v243, %v244
    %v246 = vsel %vm169, %v219, 0.0
    %v247 = vadd.f32 %v245, %v246
    %v248 = vsel %vm169, %v220, 0.0
    %v249 = vadd.f32 %v247, %v248
    %v250 = vsel %vm169, %v221, 0.0
    %v251 = vadd.f32 %v249, %v250
    %v252 = vsel %vm169, %v222, 0.0
    %v253 = vadd.f32 %v251, %v252
    %v254 = vrot.slane %v253, 4
    %v255 = vadd.f32 %v253, %v254
    %v256 = vrot.slane %v255, 2
    %v257 = vadd.f32 %v255, %v256
    %v258 = vrot.slane %v257, 1
    %v259 = vadd.f32 %v257, %v258
    %v260 = vlaneseq
    %v261 = vshrl.u32 %v260, 7
    %vm262 = vcmp.eq.s32.totalorder %v261, 0
    %vm263 = vcmp.eq.s32.totalorder %v261, 1
    %v264 = vsel %vm263, %v259, 0.0
    %v265 = vsel %vm262, %v206, %v264
    %266 = vst.msk [vmem:[#allocation2] sm:$0xff] %vm169, %v265
    %v267 = vpack.c.bf16 %v130, %v130
    %v268 = vpack.c.bf16 %v132, %v132
    %v269 = vpack.c.bf16 %v135, %v135
    %v270 = vpack.c.bf16 %v137, %v137
    %v271 = vpack.c.bf16 %v140, %v140
    %v272 = vpack.c.bf16 %v142, %v142
    %v273 = vpack.c.bf16 %v145, %v145
    %v274 = vpack.c.bf16 %v147, %v147
    %v275 = vpack.c.bf16 %v150, %v150
    %v276 = vpack.c.bf16 %v152, %v152
    %v277 = vpack.c.bf16 %v155, %v155
    %v278 = vpack.c.bf16 %v157, %v157
    %v279 = vpack.c.bf16 %v160, %v160
    %v280 = vpack.c.bf16 %v162, %v162
    %v281 = vpack.c.bf16 %v165, %v165
    %v282 = vpack.c.bf16 %v167, %v167
    %vm283 = vcmask 60416
    %284 = vst.msk [vmem:[%s2] sm:$0xf] %vm283, %v267
    %285 = vst.msk [vmem:[%s2 + $0x4] sm:$0xf] %vm283, %v268
    %286 = vst.msk [vmem:[%s2 + $0x8] sm:$0xf] %vm283, %v269
    %287 = vst.msk [vmem:[%s2 + $0xc] sm:$0xf] %vm283, %v270
    %288 = vst.msk [vmem:[%s2 + $0x10] sm:$0xf] %vm283, %v271
    %289 = vst.msk [vmem:[%s2 + $0x14] sm:$0xf] %vm283, %v272
    %290 = vst.msk [vmem:[%s2 + $0x18] sm:$0xf] %vm283, %v273
    %291 = vst.msk [vmem:[%s2 + $0x1c] sm:$0xf] %vm283, %v274
    %292 = vst.msk [vmem:[%s2 + $0x20] sm:$0xf] %vm283, %v275
    %293 = vst.msk [vmem:[%s2 + $0x24] sm:$0xf] %vm283, %v276
    %294 = vst.msk [vmem:[%s2 + $0x28] sm:$0xf] %vm283, %v277
    %295 = vst.msk [vmem:[%s2 + $0x2c] sm:$0xf] %vm283, %v278
    %296 = vst.msk [vmem:[%s2 + $0x30] sm:$0xf] %vm283, %v279
    %297 = vst.msk [vmem:[%s2 + $0x34] sm:$0xf] %vm283, %v280
    %298 = vst.msk [vmem:[%s2 + $0x38] sm:$0xf] %vm283, %v281
    %299 = vst.msk [vmem:[%s2 + $0x3c] sm:$0xf] %vm283, %v282
    // Predicated region
    $region10: #{tpu_custom_call.1} parent=1 // pred_check
      _
    $region11: #{tpu_custom_call.1} parent=1 // pred_check_branch
      %301 = sbr.rel (0) target = $region13
    $region12: #{tpu_custom_call.1} parent=1 // pred_region
      _
    $region13: #{tpu_custom_call.1} parent=1 // pred_fallthru
      _
    // Predicated region
    $region14: #{tpu_custom_call.1} parent=1 // pred_check
      _
    $region15: #{tpu_custom_call.1} parent=1 // pred_check_branch
      %303 = sbr.rel (0) target = $region17
    $region16: #{tpu_custom_call.1} parent=1 // pred_region
      %305 = vsyncadd [#allocation3], 0
      %s307 = sshll.u32 [#allocation2], 4
      %s308 = int_to_ptr.vmem [resolvable:$true] %s307
      %s309 = sshll.u32 %s3, 4
      %s310 = int_to_ptr.hbm [resolvable:$true] %s309
      %312 = dma.vmem_to_hbm [thread:$0]  %s308, 128, %s310, [#allocation3]
    $region17: #{tpu_custom_call.1} parent=1 // pred_fallthru
      _
    // Predicated region
    $region18: #{tpu_custom_call.1} parent=1 // pred_check
      _
    $region19: #{tpu_custom_call.1} parent=1 // pred_check_branch
      %314 = sbr.rel (0) target = $region21
    $region20: #{tpu_custom_call.1} parent=1 // pred_region
      _
    $region21: #{tpu_custom_call.1} parent=1 // pred_fallthru
      _
    // Predicated region
    $region22: #{tpu_custom_call.1} parent=1 // pred_check
      _
    $region23: #{tpu_custom_call.1} parent=1 // pred_check_branch
      %316 = sbr.rel (0) target = $region25
    $region24: #{tpu_custom_call.1} parent=1 // pred_region
      %318 = dma.done [#allocation3], 128
    $region25: #{tpu_custom_call.1} parent=1 // pred_fallthru
      _
    %319 = vsyncpa [#allocation3], 1

</llo_original>
